<compile_context>
chip_gen: v7x
topology: tpu7x:2x2x1
jax: 0.10.0
libtpu: 0.0.40
codegen_flags: <defaults>
</compile_context>

<pallas_src>
import jax
import jax.numpy as jnp
from jax.experimental import pallas as pl
from jax.experimental.pallas import tpu as pltpu


def _gcn_kernel(a_ref, x_ref, w_ref, b_ref, o_ref):
    # a_ref: (N, N)      bf16  adjacency, shared across the batch
    # x_ref: (Bt*N, F)   bf16  Bt samples' node features, rows flattened
    # w_ref: (F, Hp)     bf16  weight, hidden dim padded to a multiple of 128
    # b_ref: (1, Hp)     f32   bias
    # o_ref: (Bt*N, Hp)  f32   lane-dense output slab
    n = a_ref.shape[0]
    bt = x_ref.shape[0] // n

    # Fused leg: one large MXU matmul over all Bt*N rows (f32 accumulation).
    xw = jnp.dot(x_ref[...], w_ref[...],
                 preferred_element_type=jnp.float32)          # (Bt*N, Hp)

    a = a_ref[...]
    bias = b_ref[...]

    # Per-sample adjacency leg on lane-dense (N, Hp) tiles; static unrolled
    # loop, slices land on sublane-aligned row offsets (multiples of N).
    for b in range(bt):
        rows = slice(b * n, (b + 1) * n)
        yb = jnp.dot(a, xw[rows, :].astype(jnp.bfloat16),
                     preferred_element_type=jnp.float32)       # (N, Hp)
        yb = jnp.maximum(yb + bias, 0.0)                       # f32 epilogue
        o_ref[rows, :] = yb.astype(o_ref.dtype)


def _round_up(x, m):
    return (x + m - 1) // m * m


def _choose_block_b(B, N):
    """Pick Bt so Bt*N ~ 128-256 fused rows, Bt | B, and >=2 grid steps if possible."""
    target = max(1, 256 // max(N, 1))
    if B >= 2:
        target = min(target, B // 2)   # keep >=2 parallel steps (v7x: 2 TCs)
    target = max(1, min(target, B))
    for bt in range(target, 0, -1):
        if B % bt == 0:
            return bt
    return 1


def wrapper_net_forward(A, X, W, b, *, block_b=None):
    """Pallas WrapperNet.forward: net(A, X) = relu(A @ X @ W + b)."""
    B, N, F = X.shape
    F2, H = W.shape
    assert F2 == F

    # Lane-dense output: pad hidden dim to a multiple of 128 (zeros), slice off
    # outside the kernel. relu(0 + 0) = 0, so the pad columns stay inert.
    Hp = _round_up(H, 128)
    if Hp != H:
        W = jnp.pad(W, ((0, 0), (0, Hp - H)))
        b = jnp.pad(b, (0, Hp - H))

    bt = _choose_block_b(B, N) if block_b is None else block_b
    assert B % bt == 0, (B, bt)
    grid_b = B // bt

    # bf16 MXU inputs, f32 accumulation inside the kernel.
    A_bf = A.astype(jnp.bfloat16)
    X2 = X.reshape(B * N, F).astype(jnp.bfloat16)   # layout plumbing in wrapper
    W_bf = W.astype(jnp.bfloat16)
    b2 = b.reshape(1, Hp).astype(jnp.float32)

    flops = 2 * B * (N * F * Hp + N * N * Hp)
    bytes_accessed = (A_bf.size * 2 + X2.size * 2 + W_bf.size * 2
                      + b2.size * 4 + B * N * Hp * 4)

    out2 = pl.pallas_call(
        _gcn_kernel,
        out_shape=jax.ShapeDtypeStruct((B * N, Hp), jnp.float32),
        grid=(grid_b,),
        in_specs=[
            pl.BlockSpec((N, N), lambda i: (0, 0)),           # A (grid-invariant)
            pl.BlockSpec((bt * N, F), lambda i: (i, 0)),      # X rows of this block
            pl.BlockSpec((F, Hp), lambda i: (0, 0)),          # W (grid-invariant)
            pl.BlockSpec((1, Hp), lambda i: (0, 0)),          # bias (grid-invariant)
        ],
        out_specs=pl.BlockSpec((bt * N, Hp), lambda i: (i, 0)),
        compiler_params=pltpu.CompilerParams(
            dimension_semantics=("parallel",),
            vmem_limit_bytes=32 * 1024 * 1024,
        ),
        cost_estimate=pl.CostEstimate(
            flops=flops, transcendentals=0, bytes_accessed=bytes_accessed),
    )(A_bf, X2, W_bf, b2)

    out = out2.reshape(B, N, Hp)
    return out[..., :H] if Hp != H else out


def reference_forward(A, X, W, b):
    """Plain-JAX f32 reference mirroring the PyTorch semantics."""
    y = jnp.einsum("nm,bmf->bnf", A, X)
    y = jnp.einsum("bnf,fh->bnh", y, W) + b[None, None, :]
    return jnp.maximum(y, 0.0)


if __name__ == "__main__":
    # Small deterministic shapes: batch=16, nodes=16, features=32, hidden=32.
    # (B=16 with Bt=8 -> 128 fused MXU rows per step and 2 parallel grid steps.)
    B, N, F, H = 16, 16, 32, 32

    key = jax.random.PRNGKey(0)
    k_a, k_x, k_w, k_b = jax.random.split(key, 4)

    # Buffer A (registered buffer in WrapperNet): row-normalized adjacency.
    A_raw = jax.random.uniform(k_a, (N, N), dtype=jnp.float32)
    A = A_raw / jnp.sum(A_raw, axis=-1, keepdims=True)

    X = jax.random.normal(k_x, (B, N, F), dtype=jnp.float32)

    # Deterministic inner-net parameters.
    W = jax.random.normal(k_w, (F, H), dtype=jnp.float32) * 0.1
    bias = jax.random.normal(k_b, (H,), dtype=jnp.float32) * 0.1

    out = jax.block_until_ready(wrapper_net_forward(A, X, W, bias))
    ref = reference_forward(A, X, W, bias)

    assert out.shape == (B, N, H)
    # bf16 matmul inputs with f32 accumulation -> loosened tolerance vs f32 ref.
    max_err = float(jnp.max(jnp.abs(out - ref)))
    assert jnp.allclose(out, ref, atol=2e-2, rtol=2e-2), max_err

    print("KERNEL_OK")
</pallas_src>

<mosaic_0001>
module attributes {stable_mosaic.version = 11 : i64} {
  func.func @_gcn_kernel(%arg0: i32, %arg1: memref<16x16xbf16, #tpu.memory_space<vmem>>, %arg2: memref<128x32xbf16, #tpu.memory_space<vmem>>, %arg3: memref<32x128xbf16, #tpu.memory_space<vmem>>, %arg4: memref<1x128xf32, #tpu.memory_space<vmem>>, %arg5: memref<128x128xf32, #tpu.memory_space<vmem>>) attributes {dimension_semantics = [#tpu.dimension_semantics<parallel>], iteration_bounds = array<i64: 2>, scalar_prefetch = 0 : i64, scratch_operands = 0 : i64, tpu.core_type = #tpu.core_type<tc>, window_params = [{pipeline_mode = #tpu.pipeline_mode<synchronous>, transform_indices = @transform_0, window_bounds = array<i64: 16, 16>}, {transform_indices = @transform_1, window_bounds = array<i64: 128, 32>}, {pipeline_mode = #tpu.pipeline_mode<synchronous>, transform_indices = @transform_2, window_bounds = array<i64: 32, 128>}, {pipeline_mode = #tpu.pipeline_mode<synchronous>, transform_indices = @transform_3, window_bounds = array<i64: 1, 128>}, {transform_indices = @transform_4, window_bounds = array<i64: 128, 128>}]} {
    %c0 = arith.constant 0 : index
    %c0_0 = arith.constant 0 : index
    %0 = vector.load %arg2[%c0, %c0_0] : memref<128x32xbf16, #tpu.memory_space<vmem>>, vector<128x32xbf16>
    %c0_1 = arith.constant 0 : index
    %c0_2 = arith.constant 0 : index
    %1 = vector.load %arg3[%c0_1, %c0_2] : memref<32x128xbf16, #tpu.memory_space<vmem>>, vector<32x128xbf16>
    %cst = arith.constant dense<0.000000e+00> : vector<128x128xf32>
    %2 = tpu.matmul %0, %1, %cst {dimension_numbers = #tpu.dot_dimension_numbers<[1], [0], [0], [1], [0, 0, 1, 1], [], []>} : vector<128x32xbf16>, vector<32x128xbf16>, vector<128x128xf32> -> vector<128x128xf32>
    %c0_3 = arith.constant 0 : index
    %c0_4 = arith.constant 0 : index
    %3 = vector.load %arg1[%c0_3, %c0_4] : memref<16x16xbf16, #tpu.memory_space<vmem>>, vector<16x16xbf16>
    %c0_5 = arith.constant 0 : index
    %c0_6 = arith.constant 0 : index
    %4 = vector.load %arg4[%c0_5, %c0_6] : memref<1x128xf32, #tpu.memory_space<vmem>>, vector<1x128xf32>
    %5 = vector.extract_strided_slice %2 {offsets = [0, 0], sizes = [16, 128], strides = [1, 1]} : vector<128x128xf32> to vector<16x128xf32>
    %6 = arith.truncf %5 : vector<16x128xf32> to vector<16x128xbf16>
    %cst_7 = arith.constant dense<0.000000e+00> : vector<16x128xf32>
    %7 = tpu.matmul %3, %6, %cst_7 {dimension_numbers = #tpu.dot_dimension_numbers<[1], [0], [0], [1], [0, 0, 1, 1], [], []>} : vector<16x16xbf16>, vector<16x128xbf16>, vector<16x128xf32> -> vector<16x128xf32>
    %8 = vector.broadcast %4 : vector<1x128xf32> to vector<16x128xf32>
    %9 = arith.addf %7, %8 : vector<16x128xf32>
    %cst_8 = arith.constant 0.000000e+00 : f32
    %10 = vector.broadcast %cst_8 : f32 to vector<16x128xf32>
    %11 = arith.maximumf %9, %10 : vector<16x128xf32>
    %c0_9 = arith.constant 0 : index
    %c0_10 = arith.constant 0 : index
    %12 = vector.load %arg5[%c0_9, %c0_10] : memref<128x128xf32, #tpu.memory_space<vmem>>, vector<16x128xf32>
    tpu.vector_store %arg5[%c0_9, %c0_10], %11 {strides = array<i32>} : memref<128x128xf32, #tpu.memory_space<vmem>>, vector<16x128xf32>,
    %13 = vector.extract_strided_slice %2 {offsets = [16, 0], sizes = [16, 128], strides = [1, 1]} : vector<128x128xf32> to vector<16x128xf32>
    %14 = arith.truncf %13 : vector<16x128xf32> to vector<16x128xbf16>
    %cst_11 = arith.constant dense<0.000000e+00> : vector<16x128xf32>
    %15 = tpu.matmul %3, %14, %cst_11 {dimension_numbers = #tpu.dot_dimension_numbers<[1], [0], [0], [1], [0, 0, 1, 1], [], []>} : vector<16x16xbf16>, vector<16x128xbf16>, vector<16x128xf32> -> vector<16x128xf32>
    %16 = vector.broadcast %4 : vector<1x128xf32> to vector<16x128xf32>
    %17 = arith.addf %15, %16 : vector<16x128xf32>
    %cst_12 = arith.constant 0.000000e+00 : f32
    %18 = vector.broadcast %cst_12 : f32 to vector<16x128xf32>
    %19 = arith.maximumf %17, %18 : vector<16x128xf32>
    %c16 = arith.constant 16 : index
    %c0_13 = arith.constant 0 : index
    %20 = vector.load %arg5[%c16, %c0_13] : memref<128x128xf32, #tpu.memory_space<vmem>>, vector<16x128xf32>
    tpu.vector_store %arg5[%c16, %c0_13], %19 {strides = array<i32>} : memref<128x128xf32, #tpu.memory_space<vmem>>, vector<16x128xf32>,
    %21 = vector.extract_strided_slice %2 {offsets = [32, 0], sizes = [16, 128], strides = [1, 1]} : vector<128x128xf32> to vector<16x128xf32>
    %22 = arith.truncf %21 : vector<16x128xf32> to vector<16x128xbf16>
    %cst_14 = arith.constant dense<0.000000e+00> : vector<16x128xf32>
    %23 = tpu.matmul %3, %22, %cst_14 {dimension_numbers = #tpu.dot_dimension_numbers<[1], [0], [0], [1], [0, 0, 1, 1], [], []>} : vector<16x16xbf16>, vector<16x128xbf16>, vector<16x128xf32> -> vector<16x128xf32>
    %24 = vector.broadcast %4 : vector<1x128xf32> to vector<16x128xf32>
    %25 = arith.addf %23, %24 : vector<16x128xf32>
    %cst_15 = arith.constant 0.000000e+00 : f32
    %26 = vector.broadcast %cst_15 : f32 to vector<16x128xf32>
    %27 = arith.maximumf %25, %26 : vector<16x128xf32>
    %c32 = arith.constant 32 : index
    %c0_16 = arith.constant 0 : index
    %28 = vector.load %arg5[%c32, %c0_16] : memref<128x128xf32, #tpu.memory_space<vmem>>, vector<16x128xf32>
    tpu.vector_store %arg5[%c32, %c0_16], %27 {strides = array<i32>} : memref<128x128xf32, #tpu.memory_space<vmem>>, vector<16x128xf32>,
    %29 = vector.extract_strided_slice %2 {offsets = [48, 0], sizes = [16, 128], strides = [1, 1]} : vector<128x128xf32> to vector<16x128xf32>
    %30 = arith.truncf %29 : vector<16x128xf32> to vector<16x128xbf16>
    %cst_17 = arith.constant dense<0.000000e+00> : vector<16x128xf32>
    %31 = tpu.matmul %3, %30, %cst_17 {dimension_numbers = #tpu.dot_dimension_numbers<[1], [0], [0], [1], [0, 0, 1, 1], [], []>} : vector<16x16xbf16>, vector<16x128xbf16>, vector<16x128xf32> -> vector<16x128xf32>
    %32 = vector.broadcast %4 : vector<1x128xf32> to vector<16x128xf32>
    %33 = arith.addf %31, %32 : vector<16x128xf32>
    %cst_18 = arith.constant 0.000000e+00 : f32
    %34 = vector.broadcast %cst_18 : f32 to vector<16x128xf32>
    %35 = arith.maximumf %33, %34 : vector<16x128xf32>
    %c48 = arith.constant 48 : index
    %c0_19 = arith.constant 0 : index
    %36 = vector.load %arg5[%c48, %c0_19] : memref<128x128xf32, #tpu.memory_space<vmem>>, vector<16x128xf32>
    tpu.vector_store %arg5[%c48, %c0_19], %35 {strides = array<i32>} : memref<128x128xf32, #tpu.memory_space<vmem>>, vector<16x128xf32>,
    %37 = vector.extract_strided_slice %2 {offsets = [64, 0], sizes = [16, 128], strides = [1, 1]} : vector<128x128xf32> to vector<16x128xf32>
    %38 = arith.truncf %37 : vector<16x128xf32> to vector<16x128xbf16>
    %cst_20 = arith.constant dense<0.000000e+00> : vector<16x128xf32>
    %39 = tpu.matmul %3, %38, %cst_20 {dimension_numbers = #tpu.dot_dimension_numbers<[1], [0], [0], [1], [0, 0, 1, 1], [], []>} : vector<16x16xbf16>, vector<16x128xbf16>, vector<16x128xf32> -> vector<16x128xf32>
    %40 = vector.broadcast %4 : vector<1x128xf32> to vector<16x128xf32>
    %41 = arith.addf %39, %40 : vector<16x128xf32>
    %cst_21 = arith.constant 0.000000e+00 : f32
    %42 = vector.broadcast %cst_21 : f32 to vector<16x128xf32>
    %43 = arith.maximumf %41, %42 : vector<16x128xf32>
    %c64 = arith.constant 64 : index
    %c0_22 = arith.constant 0 : index
    %44 = vector.load %arg5[%c64, %c0_22] : memref<128x128xf32, #tpu.memory_space<vmem>>, vector<16x128xf32>
    tpu.vector_store %arg5[%c64, %c0_22], %43 {strides = array<i32>} : memref<128x128xf32, #tpu.memory_space<vmem>>, vector<16x128xf32>,
    %45 = vector.extract_strided_slice %2 {offsets = [80, 0], sizes = [16, 128], strides = [1, 1]} : vector<128x128xf32> to vector<16x128xf32>
    %46 = arith.truncf %45 : vector<16x128xf32> to vector<16x128xbf16>
    %cst_23 = arith.constant dense<0.000000e+00> : vector<16x128xf32>
    %47 = tpu.matmul %3, %46, %cst_23 {dimension_numbers = #tpu.dot_dimension_numbers<[1], [0], [0], [1], [0, 0, 1, 1], [], []>} : vector<16x16xbf16>, vector<16x128xbf16>, vector<16x128xf32> -> vector<16x128xf32>
    %48 = vector.broadcast %4 : vector<1x128xf32> to vector<16x128xf32>
    %49 = arith.addf %47, %48 : vector<16x128xf32>
    %cst_24 = arith.constant 0.000000e+00 : f32
    %50 = vector.broadcast %cst_24 : f32 to vector<16x128xf32>
    %51 = arith.maximumf %49, %50 : vector<16x128xf32>
    %c80 = arith.constant 80 : index
    %c0_25 = arith.constant 0 : index
    %52 = vector.load %arg5[%c80, %c0_25] : memref<128x128xf32, #tpu.memory_space<vmem>>, vector<16x128xf32>
    tpu.vector_store %arg5[%c80, %c0_25], %51 {strides = array<i32>} : memref<128x128xf32, #tpu.memory_space<vmem>>, vector<16x128xf32>,
    %53 = vector.extract_strided_slice %2 {offsets = [96, 0], sizes = [16, 128], strides = [1, 1]} : vector<128x128xf32> to vector<16x128xf32>
    %54 = arith.truncf %53 : vector<16x128xf32> to vector<16x128xbf16>
    %cst_26 = arith.constant dense<0.000000e+00> : vector<16x128xf32>
    %55 = tpu.matmul %3, %54, %cst_26 {dimension_numbers = #tpu.dot_dimension_numbers<[1], [0], [0], [1], [0, 0, 1, 1], [], []>} : vector<16x16xbf16>, vector<16x128xbf16>, vector<16x128xf32> -> vector<16x128xf32>
    %56 = vector.broadcast %4 : vector<1x128xf32> to vector<16x128xf32>
    %57 = arith.addf %55, %56 : vector<16x128xf32>
    %cst_27 = arith.constant 0.000000e+00 : f32
    %58 = vector.broadcast %cst_27 : f32 to vector<16x128xf32>
    %59 = arith.maximumf %57, %58 : vector<16x128xf32>
    %c96 = arith.constant 96 : index
    %c0_28 = arith.constant 0 : index
    %60 = vector.load %arg5[%c96, %c0_28] : memref<128x128xf32, #tpu.memory_space<vmem>>, vector<16x128xf32>
    tpu.vector_store %arg5[%c96, %c0_28], %59 {strides = array<i32>} : memref<128x128xf32, #tpu.memory_space<vmem>>, vector<16x128xf32>,
    %61 = vector.extract_strided_slice %2 {offsets = [112, 0], sizes = [16, 128], strides = [1, 1]} : vector<128x128xf32> to vector<16x128xf32>
    %62 = arith.truncf %61 : vector<16x128xf32> to vector<16x128xbf16>
    %cst_29 = arith.constant dense<0.000000e+00> : vector<16x128xf32>
    %63 = tpu.matmul %3, %62, %cst_29 {dimension_numbers = #tpu.dot_dimension_numbers<[1], [0], [0], [1], [0, 0, 1, 1], [], []>} : vector<16x16xbf16>, vector<16x128xbf16>, vector<16x128xf32> -> vector<16x128xf32>
    %64 = vector.broadcast %4 : vector<1x128xf32> to vector<16x128xf32>
    %65 = arith.addf %63, %64 : vector<16x128xf32>
    %cst_30 = arith.constant 0.000000e+00 : f32
    %66 = vector.broadcast %cst_30 : f32 to vector<16x128xf32>
    %67 = arith.maximumf %65, %66 : vector<16x128xf32>
    %c112 = arith.constant 112 : index
    %c0_31 = arith.constant 0 : index
    %68 = vector.load %arg5[%c112, %c0_31] : memref<128x128xf32, #tpu.memory_space<vmem>>, vector<16x128xf32>
    tpu.vector_store %arg5[%c112, %c0_31], %67 {strides = array<i32>} : memref<128x128xf32, #tpu.memory_space<vmem>>, vector<16x128xf32>,
    return
  }
  func.func @transform_0(%arg0: i32) -> (i32, i32) {
    %c0_i32 = arith.constant 0 : i32
    %c0_i32_0 = arith.constant 0 : i32
    %c0_i32_1 = arith.constant 0 : i32
    return %c0_i32, %c0_i32_0 : i32, i32
  }
  func.func @transform_1(%arg0: i32) -> (i32, i32) {
    %c0_i32 = arith.constant 0 : i32
    %c0_i32_0 = arith.constant 0 : i32
    return %arg0, %c0_i32 : i32, i32
  }
  func.func @transform_2(%arg0: i32) -> (i32, i32) {
    %c0_i32 = arith.constant 0 : i32
    %c0_i32_0 = arith.constant 0 : i32
    %c0_i32_1 = arith.constant 0 : i32
    return %c0_i32, %c0_i32_0 : i32, i32
  }
  func.func @transform_3(%arg0: i32) -> (i32, i32) {
    %c0_i32 = arith.constant 0 : i32
    %c0_i32_0 = arith.constant 0 : i32
    %c0_i32_1 = arith.constant 0 : i32
    return %c0_i32, %c0_i32_0 : i32, i32
  }
  func.func @transform_4(%arg0: i32) -> (i32, i32) {
    %c0_i32 = arith.constant 0 : i32
    %c0_i32_0 = arith.constant 0 : i32
    return %arg0, %c0_i32 : i32, i32
  }
}

</mosaic_0001>

<llo_original>
// kernel: tpu_custom_call.1
$region0: #{tpu_custom_call.1}
  #allocation0 [shape = 'u32[]', space=smem, size = 0x4, offset = 0x4, fixed_abs, tag = 'smem constant byte address 0x4 - core index']
  #allocation1 [shape = 'u32[144,128]{1,0:T(1,128)}', space=vmem, size = 0x12000, scoped, tag = 'internal scratch']
  %s0 = inlined_call_operand.vmem [shape: bf16[16,16], index: 0, kind: input, shape index: {}]
  %s1 = inlined_call_operand.vmem [shape: bf16[256,32], index: 1, kind: input, shape index: {}]
  %s2 = inlined_call_operand.vmem [shape: bf16[32,128], index: 2, kind: input, shape index: {}]
  %s3 = inlined_call_operand.vmem [shape: f32[1,128], index: 3, kind: input, shape index: {}]
  %s4 = inlined_call_operand.hbm [shape: f32[256,128], index: 4, kind: output, shape index: {}]
  %s5 = sld [smem:[#allocation0]]
  $region49: #{tpu_custom_call.1} parent=0
    _
  %s7 = ssub.s32 1, %s5
  %s8 = scalar_select 0, %s7, %s5
  $region1: #{tpu_custom_call.1} parent=0
    #allocation2 [shape = 'u8[131072]{0}', space=vmem, size = 0x20000, scoped, tag = 'output window, operand 0']
    #allocation3 [shape = 's32[2]{0}', space=sflag, size = 0x8, scoped, tag = 'scoped memory for tpu_custom_call.1']
    %9 = vsyncpa [#allocation3], 0
    %s10 = scalar_lea.sflag [#allocation3], 1
    %11 = vsyncpa %s10, 0
    loop: start=0, step=1, limit=4
    $region2: #{tpu_custom_call.1} parent=1 // loop_pre_header
      _
    $region3: #{tpu_custom_call.1} parent=1 // loop_header
      %s13 = sphi 0, %s17
      %p14 = scmp.ge.s32.totalorder %s13, 4
      %s21 = sphi 0, %s21
      %s23 = sphi 0, %s21
      %s24 = sphi 0, %s23
      %s38 = sphi 0, %s24
      %s44 = sphi 0, %s46
      %s47 = sphi 0, %s44
      %s48 = sphi 0, %s47
      %s64 = sphi 0, %s48
      %s68 = sphi 0, %s68
      %s70 = sphi 0, %s68
      %s71 = sphi 0, %s70
      %s85 = sphi 0, %s71
      %s89 = sphi 0, %s89
      %s91 = sphi 0, %s89
      %s92 = sphi 0, %s91
      %s106 = sphi 0, %s92
      %s112 = sphi 0, %s114
      %s115 = sphi 0, %s112
      %s116 = sphi 0, %s115
      %s132 = sphi 0, %s116
    $region4: #{tpu_custom_call.1} parent=1 // loop_header_branch
      %16 = sbr.rel (%p14) target = $region8
    $region5: #{tpu_custom_call.1} parent=1 // loop_body
      %s18 = ssub.s32 %s13, 1
      %s19 = ssub.s32 %s13, 2
      %s20 = sadd.s32 %s13, 1
      %s22 = sadd.s32 %s21, 1
      %p25 = scmp.eq.s32.totalorder %s13, 1
      %p26 = scmp.ne.s32.totalorder %s21, %s23
      %p27 = scmp.eq.s32.totalorder %s13, 0
      %p28 = por %p26, %p27
      %p29 = scmp.ne.s32.totalorder %s21, %s23
      %p30 = scmp.eq.s32.totalorder %s18, 1
      %p31 = por %p29, %p30
      %p32 = scmp.ne.s32.totalorder %s23, %s24
      %p33 = scmp.eq.s32.totalorder %s18, 0
      %p34 = por %p32, %p33
      %p35 = scmp.ne.s32.totalorder %s23, %s24
      %p36 = scmp.eq.s32.totalorder %s19, 1
      %p37 = por %p35, %p36
      %p39 = scmp.ne.s32.totalorder %s24, %s38
      %p40 = scmp.eq.s32.totalorder %s19, 0
      %p41 = por %p39, %p40
      %s42 = ssub.s32 %s13, %s20
      %p43 = scmp.eq.s32.totalorder %s42, 0
      %s45 = sadd.s32 %s44, 1
      %s46 = scalar_select %p43, %s44, %s45
      %p49 = pneg %p43
      %p50 = scmp.eq.s32.totalorder %s13, 1
      %p51 = por %p49, %p50
      %p52 = scmp.ne.s32.totalorder %s44, %s47
      %p53 = scmp.eq.s32.totalorder %s13, 0
      %p54 = por %p52, %p53
      %p55 = scmp.ne.s32.totalorder %s44, %s47
      %p56 = scmp.eq.s32.totalorder %s18, 1
      %p57 = por %p55, %p56
      %p58 = scmp.ne.s32.totalorder %s47, %s48
      %p59 = scmp.eq.s32.totalorder %s18, 0
      %p60 = por %p58, %p59
      %p61 = scmp.ne.s32.totalorder %s47, %s48
      %p62 = scmp.eq.s32.totalorder %s19, 1
      %p63 = por %p61, %p62
      %p65 = scmp.ne.s32.totalorder %s48, %s64
      %p66 = scmp.eq.s32.totalorder %s19, 0
      %p67 = por %p65, %p66
      %s69 = sadd.s32 %s68, 1
      %p72 = scmp.eq.s32.totalorder %s13, 1
      %p73 = scmp.ne.s32.totalorder %s68, %s70
      %p74 = scmp.eq.s32.totalorder %s13, 0
      %p75 = por %p73, %p74
      %p76 = scmp.ne.s32.totalorder %s68, %s70
      %p77 = scmp.eq.s32.totalorder %s18, 1
      %p78 = por %p76, %p77
      %p79 = scmp.ne.s32.totalorder %s70, %s71
      %p80 = scmp.eq.s32.totalorder %s18, 0
      %p81 = por %p79, %p80
      %p82 = scmp.ne.s32.totalorder %s70, %s71
      %p83 = scmp.eq.s32.totalorder %s19, 1
      %p84 = por %p82, %p83
      %p86 = scmp.ne.s32.totalorder %s71, %s85
      %p87 = scmp.eq.s32.totalorder %s19, 0
      %p88 = por %p86, %p87
      %s90 = sadd.s32 %s89, 1
      %p93 = scmp.eq.s32.totalorder %s13, 1
      %p94 = scmp.ne.s32.totalorder %s89, %s91
      %p95 = scmp.eq.s32.totalorder %s13, 0
      %p96 = por %p94, %p95
      %p97 = scmp.ne.s32.totalorder %s89, %s91
      %p98 = scmp.eq.s32.totalorder %s18, 1
      %p99 = por %p97, %p98
      %p100 = scmp.ne.s32.totalorder %s91, %s92
      %p101 = scmp.eq.s32.totalorder %s18, 0
      %p102 = por %p100, %p101
      %p103 = scmp.ne.s32.totalorder %s91, %s92
      %p104 = scmp.eq.s32.totalorder %s19, 1
      %p105 = por %p103, %p104
      %p107 = scmp.ne.s32.totalorder %s92, %s106
      %p108 = scmp.eq.s32.totalorder %s19, 0
      %p109 = por %p107, %p108
      %s110 = ssub.s32 %s13, %s20
      %p111 = scmp.eq.s32.totalorder %s110, 0
      %s113 = sadd.s32 %s112, 1
      %s114 = scalar_select %p111, %s112, %s113
      %p117 = pneg %p111
      %p118 = scmp.eq.s32.totalorder %s13, 1
      %p119 = por %p117, %p118
      %p120 = scmp.ne.s32.totalorder %s112, %s115
      %p121 = scmp.eq.s32.totalorder %s13, 0
      %p122 = por %p120, %p121
      %p123 = scmp.ne.s32.totalorder %s112, %s115
      %p124 = scmp.eq.s32.totalorder %s18, 1
      %p125 = por %p123, %p124
      %p126 = scmp.ne.s32.totalorder %s115, %s116
      %p127 = scmp.eq.s32.totalorder %s18, 0
      %p128 = por %p126, %p127
      %p129 = scmp.ne.s32.totalorder %s115, %s116
      %p130 = scmp.eq.s32.totalorder %s19, 1
      %p131 = por %p129, %p130
      %p133 = scmp.ne.s32.totalorder %s116, %s132
      %p134 = scmp.eq.s32.totalorder %s19, 0
      %p135 = por %p133, %p134
      %p136 = scmp.le.s32.totalorder 1, %s13
      %p137 = scmp.lt.s32.totalorder %s13, 3
      %p138 = pnand %p136, %p137
      %p139 = pneg %p138
      // Predicated region
      $region9: #{tpu_custom_call.1} parent=5 // pred_check
        _
      $region10: #{tpu_custom_call.1} parent=5 // pred_check_branch
        %141 = sbr.rel (%p138) target = $region12
      $region11: #{tpu_custom_call.1} parent=5 // pred_region
        %s142 = ssub.s32 %s13, 1
        // Predicated region
        $region13: #{tpu_custom_call.1} parent=11 // pred_check
          %p143 = pneg %p34
        $region14: #{tpu_custom_call.1} parent=11 // pred_check_branch
          %145 = sbr.rel (%p143) target = $region16
        $region15: #{tpu_custom_call.1} parent=11 // pred_region
          _
        $region16: #{tpu_custom_call.1} parent=11 // pred_fallthru
          _
        // Predicated region
        $region17: #{tpu_custom_call.1} parent=11 // pred_check
          %p146 = pneg %p81
        $region18: #{tpu_custom_call.1} parent=11 // pred_check_branch
          %148 = sbr.rel (%p146) target = $region20
        $region19: #{tpu_custom_call.1} parent=11 // pred_region
          _
        $region20: #{tpu_custom_call.1} parent=11 // pred_fallthru
          _
        // Predicated region
        $region21: #{tpu_custom_call.1} parent=11 // pred_check
          %p149 = pneg %p102
        $region22: #{tpu_custom_call.1} parent=11 // pred_check_branch
          %151 = sbr.rel (%p149) target = $region24
        $region23: #{tpu_custom_call.1} parent=11 // pred_region
          _
        $region24: #{tpu_custom_call.1} parent=11 // pred_fallthru
          _
      $region12: #{tpu_custom_call.1} parent=5 // pred_fallthru
        _
      %p152 = scmp.lt.s32.totalorder %s13, 2
      // Predicated region
      $region25: #{tpu_custom_call.1} parent=5 // pred_check
        %p153 = pneg %p152
      $region26: #{tpu_custom_call.1} parent=5 // pred_check_branch
        %155 = sbr.rel (%p153) target = $region28
      $region27: #{tpu_custom_call.1} parent=5 // pred_region
        // Predicated region
        $region29: #{tpu_custom_call.1} parent=27 // pred_check
          %p156 = pneg %p54
        $region30: #{tpu_custom_call.1} parent=27 // pred_check_branch
          %158 = sbr.rel (%p156) target = $region32
        $region31: #{tpu_custom_call.1} parent=27 // pred_region
          %s159 = smul.u32 16, %s13
          %p160 = scmp.lt.s32.totalorder %s159, 31
          %s161 = scalar_select %p160, %s159, 31
          %s162 = smul.addr %s161, 4
          %s163 = scalar_lea.vmem %s1, %s162
          %s164 = smul.u32 16, %s13
        $region32: #{tpu_custom_call.1} parent=27 // pred_fallthru
          _
      $region28: #{tpu_custom_call.1} parent=5 // pred_fallthru
        _
      %p165 = scmp.le.s32.totalorder 1, %s13
      %p166 = scmp.lt.s32.totalorder %s13, 3
      %p167 = pnand %p165, %p166
      %p168 = pneg %p167
      // Predicated region
      $region33: #{tpu_custom_call.1} parent=5 // pred_check
        _
      $region34: #{tpu_custom_call.1} parent=5 // pred_check_branch
        %170 = sbr.rel (%p167) target = $region36
      $region35: #{tpu_custom_call.1} parent=5 // pred_region
        %s171 = ssub.s32 %s13, 1
        %p172 = pneg %p34
        %p173 = pneg %p31
        %s174 = smul.u32 16, %s18
        %p175 = scmp.lt.s32.totalorder %s174, 31
        %s176 = scalar_select %p175, %s174, 31
        %s177 = smul.addr %s176, 4
        %s178 = scalar_lea.vmem %s1, %s177
        %p179 = pneg %p60
        %p180 = pneg %p57
        %p181 = pneg %p81
        %p182 = pneg %p78
        %p183 = pneg %p102
        %p184 = pneg %p99
        %p185 = pneg %p128
        %p186 = pneg %p125
        %s187 = sand.u32 %s115, 1
        %s188 = scalar_lea.sflag [#allocation3], %s187
        %s189 = sand.u32 %s115, 1
        %s190 = smul.addr %s189, 128
        %s191 = scalar_lea.vmem [#allocation2], %s190
        %s192 = smul.u32 16, %s18
        %p193 = scmp.lt.s32.totalorder %s192, 31
        %s194 = scalar_select %p193, %s192, 31
        %s195 = smul.addr %s194, 4
        %s196 = scalar_lea.vmem %s1, %s195
        %s197 = smul.u32 16, %s18
        %s198 = smul.u32 16, %s18
        %v200 = vld [vmem:[%s196] sm:$0xf]
        %v201 = vld [vmem:[%s196 + $0x4] sm:$0xf]
        %v202 = vld [vmem:[%s196 + $0x8] sm:$0xf]
        %v203 = vld [vmem:[%s196 + $0xc] sm:$0xf]
        %v204 = vld [vmem:[%s196 + $0x10] sm:$0xf]
        %v205 = vld [vmem:[%s196 + $0x14] sm:$0xf]
        %v206 = vld [vmem:[%s196 + $0x18] sm:$0xf]
        %v207 = vld [vmem:[%s196 + $0x1c] sm:$0xf]
        %v208 = vld [vmem:[%s196 + $0x20] sm:$0xf]
        %v209 = vld [vmem:[%s196 + $0x24] sm:$0xf]
        %v210 = vld [vmem:[%s196 + $0x28] sm:$0xf]
        %v211 = vld [vmem:[%s196 + $0x2c] sm:$0xf]
        %v212 = vld [vmem:[%s196 + $0x30] sm:$0xf]
        %v213 = vld [vmem:[%s196 + $0x34] sm:$0xf]
        %v214 = vld [vmem:[%s196 + $0x38] sm:$0xf]
        %v215 = vld [vmem:[%s196 + $0x3c] sm:$0xf]
        %v216 = vld [vmem:[%s2] sm:$0xf]
        %v217 = vld [vmem:[%s2 + $0x4] sm:$0xf]
        %v218 = vld [vmem:[%s2 + $0x8] sm:$0xf]
        %v219 = vld [vmem:[%s2 + $0xc] sm:$0xf]
        %v236 = vunpack.c.l.b16 %v200
        %v237 = vunpack.c.l.b16 %v201
        %v238 = vunpack.c.l.b16 %v202
        %v239 = vunpack.c.l.b16 %v203
        %v240 = vunpack.c.l.b16 %v204
        %v241 = vunpack.c.l.b16 %v205
        %v242 = vunpack.c.l.b16 %v206
        %v243 = vunpack.c.l.b16 %v207
        %v244 = vunpack.c.l.b16 %v208
        %v245 = vunpack.c.l.b16 %v209
        %v246 = vunpack.c.l.b16 %v210
        %v247 = vunpack.c.l.b16 %v211
        %v248 = vunpack.c.l.b16 %v212
        %v249 = vunpack.c.l.b16 %v213
        %v250 = vunpack.c.l.b16 %v214
        %v251 = vunpack.c.l.b16 %v215
        %v252 = vpack.c.b16 %v237, %v236
        %v253 = vpack.c.b16 %v239, %v238
        %v254 = vpack.c.b16 %v241, %v240
        %v255 = vpack.c.b16 %v243, %v242
        %v256 = vpack.c.b16 %v245, %v244
        %v257 = vpack.c.b16 %v247, %v246
        %v258 = vpack.c.b16 %v249, %v248
        %v259 = vpack.c.b16 %v251, %v250
        %v264 = vunpack.c.l.b16 %v216
        %v265 = vunpack.c.l.b16 %v217
        %v266 = vunpack.c.l.b16 %v218
        %v267 = vunpack.c.l.b16 %v219
        %v268 = vpack.c.b16 %v265, %v264
        %v269 = vpack.c.b16 %v267, %v266
        %vm272 = vcmask 261120
        %v274 = vsel %vm272, %v252, 0
        %v277 = vsel %vm272, %v253, 0
        %v280 = vsel %vm272, %v254, 0
        %v283 = vsel %vm272, %v255, 0
        %v286 = vsel %vm272, %v256, 0
        %v289 = vsel %vm272, %v257, 0
        %v292 = vsel %vm272, %v258, 0
        %v295 = vsel %vm272, %v259, 0
        %297 = vmatprep.subr.bf16.mxu0 0
        %298 = vmatpush1.bf16.msra.mxu0 %v268
        %299 = vmatprep.subr.bf16.mxu0 0
        %300 = vmatpush1.bf16.msra.mxu0 %v269
        %301 = vmatprep.subr.bf16.mxu0 0
        %302 = vmatpush1.bf16.msra.mxu0 0
        %303 = vmatprep.subr.bf16.mxu0 0
        %304 = vmatpush1.bf16.msra.mxu0 0
        %305 = vmatprep.subr.bf16.mxu0 0
        %306 = vmatpush1.bf16.msra.mxu0 0
        %307 = vmatprep.subr.bf16.mxu0 0
        %308 = vmatpush1.bf16.msra.mxu0 0
        %309 = vmatprep.subr.bf16.mxu0 0
        %310 = vmatpush1.bf16.msra.mxu0 0
        %311 = vmatprep.subr.bf16.mxu0 0
        %312 = vmatpush1.bf16.msra.mxu0 0
        %313 = vmatprep.subr.bf16.mxu0 0
        %314 = vmatpush1.bf16.msra.mxu0 0
        %315 = vmatprep.subr.bf16.mxu0 0
        %316 = vmatpush1.bf16.msra.mxu0 0
        %317 = vmatprep.subr.bf16.mxu0 0
        %318 = vmatpush1.bf16.msra.mxu0 0
        %319 = vmatprep.subr.bf16.mxu0 0
        %320 = vmatpush1.bf16.msra.mxu0 0
        %321 = vmatprep.subr.bf16.mxu0 0
        %322 = vmatpush1.bf16.msra.mxu0 0
        %323 = vmatprep.subr.bf16.mxu0 0
        %324 = vmatpush1.bf16.msra.mxu0 0
        %325 = vmatprep.subr.bf16.mxu0 0
        %326 = vmatpush1.bf16.msra.mxu0 0
        %327 = vmatprep.subr.bf16.mxu0 0
        %328 = vmatpush1.bf16.msra.mxu0 0
        %329 = vmatprep.mubr.bf16.mxu0 0
        %330 = vmatmul.mubr.bf16.gmra.mrb[0].mxu0 %v274
        %v331 = vpop.f32.mrb[0].mxu0
        %v332 = vadd.f32 0.0, %v331
        %v333 = vpop.f32.mrb[0].mxu0
        %v334 = vpop.f32.mrb[0].mxu0
        %v335 = vadd.f32 0.0, %v334
        %v336 = vpop.f32.mrb[0].mxu0
        %337 = vmatprep.mubr.bf16.mxu0 0
        %338 = vmatmul.mubr.bf16.gmra.mrb[0].mxu0 %v277
        %v339 = vpop.f32.mrb[0].mxu0
        %v340 = vadd.f32 0.0, %v339
        %v341 = vpop.f32.mrb[0].mxu0
        %v342 = vpop.f32.mrb[0].mxu0
        %v343 = vadd.f32 0.0, %v342
        %v344 = vpop.f32.mrb[0].mxu0
        %345 = vmatprep.mubr.bf16.mxu0 0
        %346 = vmatmul.mubr.bf16.gmra.mrb[0].mxu0 %v280
        %v347 = vpop.f32.mrb[0].mxu0
        %v348 = vadd.f32 0.0, %v347
        %v349 = vpop.f32.mrb[0].mxu0
        %v350 = vpop.f32.mrb[0].mxu0
        %v351 = vadd.f32 0.0, %v350
        %v352 = vpop.f32.mrb[0].mxu0
        %353 = vmatprep.mubr.bf16.mxu0 0
        %354 = vmatmul.mubr.bf16.gmra.mrb[0].mxu0 %v283
        %v355 = vpop.f32.mrb[0].mxu0
        %v356 = vadd.f32 0.0, %v355
        %v357 = vpop.f32.mrb[0].mxu0
        %v358 = vpop.f32.mrb[0].mxu0
        %v359 = vadd.f32 0.0, %v358
        %v360 = vpop.f32.mrb[0].mxu0
        %361 = vmatprep.mubr.bf16.mxu0 0
        %362 = vmatmul.mubr.bf16.gmra.mrb[0].mxu0 %v286
        %v363 = vpop.f32.mrb[0].mxu0
        %v364 = vadd.f32 0.0, %v363
        %v365 = vpop.f32.mrb[0].mxu0
        %v366 = vpop.f32.mrb[0].mxu0
        %v367 = vadd.f32 0.0, %v366
        %v368 = vpop.f32.mrb[0].mxu0
        %369 = vmatprep.mubr.bf16.mxu0 0
        %370 = vmatmul.mubr.bf16.gmra.mrb[0].mxu0 %v289
        %v371 = vpop.f32.mrb[0].mxu0
        %v372 = vadd.f32 0.0, %v371
        %v373 = vpop.f32.mrb[0].mxu0
        %v374 = vpop.f32.mrb[0].mxu0
        %v375 = vadd.f32 0.0, %v374
        %v376 = vpop.f32.mrb[0].mxu0
        %377 = vmatprep.mubr.bf16.mxu0 0
        %378 = vmatmul.mubr.bf16.gmra.mrb[0].mxu0 %v292
        %v379 = vpop.f32.mrb[0].mxu0
        %v380 = vadd.f32 0.0, %v379
        %v381 = vpop.f32.mrb[0].mxu0
        %v382 = vpop.f32.mrb[0].mxu0
        %v383 = vadd.f32 0.0, %v382
        %v384 = vpop.f32.mrb[0].mxu0
        %385 = vmatprep.mubr.bf16.mxu0 0
        %386 = vmatmul.mubr.bf16.gmra.mrb[0].mxu0 %v295
        %v387 = vpop.f32.mrb[0].mxu0
        %v388 = vadd.f32 0.0, %v387
        %v389 = vpop.f32.mrb[0].mxu0
        %v390 = vpop.f32.mrb[0].mxu0
        %v391 = vadd.f32 0.0, %v390
        %v392 = vpop.f32.mrb[0].mxu0
        %393 = vdwg.mxu0
        %v394 = vld [vmem:[%s0] sm:$0xf]
        %v395 = vld [vmem:[%s0 + $0x4] sm:$0xf]
        %v396 = vld [vmem:[%s3] sm:$0x1]
        %v397 = vpack.c.bf16 %v335, %v332
        %v399 = vlaneseq
        %v400 = vshrl.u32 %v399, 7
        %v401 = vsub.s32 0, %v400
        %v402 = vrot.slane %v396, %v401
        %v406 = vunpack.c.l.b16 %v394
        %v407 = vunpack.c.l.b16 %v395
        %v408 = vpack.c.b16 %v407, %v406
        %vm409 = vcmask 130048
        %v411 = vsel %vm409, %v408, 0
        %413 = vmatprep.subr.bf16.mxu0 0
        %414 = vmatpush1.bf16.msra.mxu0 %v397
        %415 = vmatprep.subr.bf16.mxu0 0
        %416 = vmatpush1.bf16.msra.mxu0 0
        %417 = vmatprep.subr.bf16.mxu0 0
        %418 = vmatpush1.bf16.msra.mxu0 0
        %419 = vmatprep.subr.bf16.mxu0 0
        %420 = vmatpush1.bf16.msra.mxu0 0
        %421 = vmatprep.subr.bf16.mxu0 0
        %422 = vmatpush1.bf16.msra.mxu0 0
        %423 = vmatprep.subr.bf16.mxu0 0
        %424 = vmatpush1.bf16.msra.mxu0 0
        %425 = vmatprep.subr.bf16.mxu0 0
        %426 = vmatpush1.bf16.msra.mxu0 0
        %427 = vmatprep.subr.bf16.mxu0 0
        %428 = vmatpush1.bf16.msra.mxu0 0
        %429 = vmatprep.subr.bf16.mxu0 0
        %430 = vmatpush1.bf16.msra.mxu0 0
        %431 = vmatprep.subr.bf16.mxu0 0
        %432 = vmatpush1.bf16.msra.mxu0 0
        %433 = vmatprep.subr.bf16.mxu0 0
        %434 = vmatpush1.bf16.msra.mxu0 0
        %435 = vmatprep.subr.bf16.mxu0 0
        %436 = vmatpush1.bf16.msra.mxu0 0
        %437 = vmatprep.subr.bf16.mxu0 0
        %438 = vmatpush1.bf16.msra.mxu0 0
        %439 = vmatprep.subr.bf16.mxu0 0
        %440 = vmatpush1.bf16.msra.mxu0 0
        %441 = vmatprep.subr.bf16.mxu0 0
        %442 = vmatpush1.bf16.msra.mxu0 0
        %443 = vmatprep.subr.bf16.mxu0 0
        %444 = vmatpush1.bf16.msra.mxu0 0
        %445 = vmatprep.mubr.bf16.mxu0 0
        %446 = vmatmul.mubr.bf16.gmra.mrb[0].mxu0 %v411
        %v447 = vpop.f32.mrb[0].mxu0
        %v448 = vadd.f32 %v402, %v447
        %v449 = vpop.f32.mrb[0].mxu0
        %v450 = vpop.f32.mrb[0].mxu0
        %v451 = vadd.f32 %v402, %v450
        %v452 = vpop.f32.mrb[0].mxu0
        %453 = vdwg.mxu0
        %v454 = vmax.f32 %v448, 0.0
        %v455 = vmax.f32 %v451, 0.0
        %456 = vst [vmem:[%s191] sm:$0xff] %v454
        %457 = vst [vmem:[%s191 + $0x8] sm:$0xff] %v455
        %v458 = vpack.c.bf16 %v343, %v340
        %459 = vmatprep.subr.bf16.mxu0 0
        %460 = vmatpush1.bf16.msra.mxu0 %v458
        %461 = vmatprep.subr.bf16.mxu0 0
        %462 = vmatpush1.bf16.msra.mxu0 0
        %463 = vmatprep.subr.bf16.mxu0 0
        %464 = vmatpush1.bf16.msra.mxu0 0
        %465 = vmatprep.subr.bf16.mxu0 0
        %466 = vmatpush1.bf16.msra.mxu0 0
        %467 = vmatprep.subr.bf16.mxu0 0
        %468 = vmatpush1.bf16.msra.mxu0 0
        %469 = vmatprep.subr.bf16.mxu0 0
        %470 = vmatpush1.bf16.msra.mxu0 0
        %471 = vmatprep.subr.bf16.mxu0 0
        %472 = vmatpush1.bf16.msra.mxu0 0
        %473 = vmatprep.subr.bf16.mxu0 0
        %474 = vmatpush1.bf16.msra.mxu0 0
        %475 = vmatprep.subr.bf16.mxu0 0
        %476 = vmatpush1.bf16.msra.mxu0 0
        %477 = vmatprep.subr.bf16.mxu0 0
        %478 = vmatpush1.bf16.msra.mxu0 0
        %479 = vmatprep.subr.bf16.mxu0 0
        %480 = vmatpush1.bf16.msra.mxu0 0
        %481 = vmatprep.subr.bf16.mxu0 0
        %482 = vmatpush1.bf16.msra.mxu0 0
        %483 = vmatprep.subr.bf16.mxu0 0
        %484 = vmatpush1.bf16.msra.mxu0 0
        %485 = vmatprep.subr.bf16.mxu0 0
        %486 = vmatpush1.bf16.msra.mxu0 0
        %487 = vmatprep.subr.bf16.mxu0 0
        %488 = vmatpush1.bf16.msra.mxu0 0
        %489 = vmatprep.subr.bf16.mxu0 0
        %490 = vmatpush1.bf16.msra.mxu0 0
        %491 = vmatprep.mubr.bf16.mxu0 0
        %492 = vmatmul.mubr.bf16.gmra.mrb[0].mxu0 %v411
        %v493 = vpop.f32.mrb[0].mxu0
        %v494 = vadd.f32 %v402, %v493
        %v495 = vpop.f32.mrb[0].mxu0
        %v496 = vpop.f32.mrb[0].mxu0
        %v497 = vadd.f32 %v402, %v496
        %v498 = vpop.f32.mrb[0].mxu0
        %499 = vdwg.mxu0
        %v500 = vmax.f32 %v494, 0.0
        %v501 = vmax.f32 %v497, 0.0
        %502 = vst [vmem:[%s191 + $0x10] sm:$0xff] %v500
        %503 = vst [vmem:[%s191 + $0x18] sm:$0xff] %v501
        %v504 = vpack.c.bf16 %v351, %v348
        %505 = vmatprep.subr.bf16.mxu0 0
        %506 = vmatpush1.bf16.msra.mxu0 %v504
        %507 = vmatprep.subr.bf16.mxu0 0
        %508 = vmatpush1.bf16.msra.mxu0 0
        %509 = vmatprep.subr.bf16.mxu0 0
        %510 = vmatpush1.bf16.msra.mxu0 0
        %511 = vmatprep.subr.bf16.mxu0 0
        %512 = vmatpush1.bf16.msra.mxu0 0
        %513 = vmatprep.subr.bf16.mxu0 0
        %514 = vmatpush1.bf16.msra.mxu0 0
        %515 = vmatprep.subr.bf16.mxu0 0
        %516 = vmatpush1.bf16.msra.mxu0 0
        %517 = vmatprep.subr.bf16.mxu0 0
        %518 = vmatpush1.bf16.msra.mxu0 0
        %519 = vmatprep.subr.bf16.mxu0 0
        %520 = vmatpush1.bf16.msra.mxu0 0
        %521 = vmatprep.subr.bf16.mxu0 0
        %522 = vmatpush1.bf16.msra.mxu0 0
        %523 = vmatprep.subr.bf16.mxu0 0
        %524 = vmatpush1.bf16.msra.mxu0 0
        %525 = vmatprep.subr.bf16.mxu0 0
        %526 = vmatpush1.bf16.msra.mxu0 0
        %527 = vmatprep.subr.bf16.mxu0 0
        %528 = vmatpush1.bf16.msra.mxu0 0
        %529 = vmatprep.subr.bf16.mxu0 0
        %530 = vmatpush1.bf16.msra.mxu0 0
        %531 = vmatprep.subr.bf16.mxu0 0
        %532 = vmatpush1.bf16.msra.mxu0 0
        %533 = vmatprep.subr.bf16.mxu0 0
        %534 = vmatpush1.bf16.msra.mxu0 0
        %535 = vmatprep.subr.bf16.mxu0 0
        %536 = vmatpush1.bf16.msra.mxu0 0
        %537 = vmatprep.mubr.bf16.mxu0 0
        %538 = vmatmul.mubr.bf16.gmra.mrb[0].mxu0 %v411
        %v539 = vpop.f32.mrb[0].mxu0
        %v540 = vadd.f32 %v402, %v539
        %v541 = vpop.f32.mrb[0].mxu0
        %v542 = vpop.f32.mrb[0].mxu0
        %v543 = vadd.f32 %v402, %v542
        %v544 = vpop.f32.mrb[0].mxu0
        %545 = vdwg.mxu0
        %v546 = vmax.f32 %v540, 0.0
        %v547 = vmax.f32 %v543, 0.0
        %548 = vst [vmem:[%s191 + $0x20] sm:$0xff] %v546
        %549 = vst [vmem:[%s191 + $0x28] sm:$0xff] %v547
        %v550 = vpack.c.bf16 %v359, %v356
        %551 = vmatprep.subr.bf16.mxu0 0
        %552 = vmatpush1.bf16.msra.mxu0 %v550
        %553 = vmatprep.subr.bf16.mxu0 0
        %554 = vmatpush1.bf16.msra.mxu0 0
        %555 = vmatprep.subr.bf16.mxu0 0
        %556 = vmatpush1.bf16.msra.mxu0 0
        %557 = vmatprep.subr.bf16.mxu0 0
        %558 = vmatpush1.bf16.msra.mxu0 0
        %559 = vmatprep.subr.bf16.mxu0 0
        %560 = vmatpush1.bf16.msra.mxu0 0
        %561 = vmatprep.subr.bf16.mxu0 0
        %562 = vmatpush1.bf16.msra.mxu0 0
        %563 = vmatprep.subr.bf16.mxu0 0
        %564 = vmatpush1.bf16.msra.mxu0 0
        %565 = vmatprep.subr.bf16.mxu0 0
        %566 = vmatpush1.bf16.msra.mxu0 0
        %567 = vmatprep.subr.bf16.mxu0 0
        %568 = vmatpush1.bf16.msra.mxu0 0
        %569 = vmatprep.subr.bf16.mxu0 0
        %570 = vmatpush1.bf16.msra.mxu0 0
        %571 = vmatprep.subr.bf16.mxu0 0
        %572 = vmatpush1.bf16.msra.mxu0 0
        %573 = vmatprep.subr.bf16.mxu0 0
        %574 = vmatpush1.bf16.msra.mxu0 0
        %575 = vmatprep.subr.bf16.mxu0 0
        %576 = vmatpush1.bf16.msra.mxu0 0
        %577 = vmatprep.subr.bf16.mxu0 0
        %578 = vmatpush1.bf16.msra.mxu0 0
        %579 = vmatprep.subr.bf16.mxu0 0
        %580 = vmatpush1.bf16.msra.mxu0 0
        %581 = vmatprep.subr.bf16.mxu0 0
        %582 = vmatpush1.bf16.msra.mxu0 0
        %583 = vmatprep.mubr.bf16.mxu0 0
        %584 = vmatmul.mubr.bf16.gmra.mrb[0].mxu0 %v411
        %v585 = vpop.f32.mrb[0].mxu0
        %v586 = vadd.f32 %v402, %v585
        %v587 = vpop.f32.mrb[0].mxu0
        %v588 = vpop.f32.mrb[0].mxu0
        %v589 = vadd.f32 %v402, %v588
        %v590 = vpop.f32.mrb[0].mxu0
        %591 = vdwg.mxu0
        %v592 = vmax.f32 %v586, 0.0
        %v593 = vmax.f32 %v589, 0.0
        %594 = vst [vmem:[%s191 + $0x30] sm:$0xff] %v592
        %595 = vst [vmem:[%s191 + $0x38] sm:$0xff] %v593
        %v596 = vpack.c.bf16 %v367, %v364
        %597 = vmatprep.subr.bf16.mxu0 0
        %598 = vmatpush1.bf16.msra.mxu0 %v596
        %599 = vmatprep.subr.bf16.mxu0 0
        %600 = vmatpush1.bf16.msra.mxu0 0
        %601 = vmatprep.subr.bf16.mxu0 0
        %602 = vmatpush1.bf16.msra.mxu0 0
        %603 = vmatprep.subr.bf16.mxu0 0
        %604 = vmatpush1.bf16.msra.mxu0 0
        %605 = vmatprep.subr.bf16.mxu0 0
        %606 = vmatpush1.bf16.msra.mxu0 0
        %607 = vmatprep.subr.bf16.mxu0 0
        %608 = vmatpush1.bf16.msra.mxu0 0
        %609 = vmatprep.subr.bf16.mxu0 0
        %610 = vmatpush1.bf16.msra.mxu0 0
        %611 = vmatprep.subr.bf16.mxu0 0
        %612 = vmatpush1.bf16.msra.mxu0 0
        %613 = vmatprep.subr.bf16.mxu0 0
        %614 = vmatpush1.bf16.msra.mxu0 0
        %615 = vmatprep.subr.bf16.mxu0 0
        %616 = vmatpush1.bf16.msra.mxu0 0
        %617 = vmatprep.subr.bf16.mxu0 0
        %618 = vmatpush1.bf16.msra.mxu0 0
        %619 = vmatprep.subr.bf16.mxu0 0
        %620 = vmatpush1.bf16.msra.mxu0 0
        %621 = vmatprep.subr.bf16.mxu0 0
        %622 = vmatpush1.bf16.msra.mxu0 0
        %623 = vmatprep.subr.bf16.mxu0 0
        %624 = vmatpush1.bf16.msra.mxu0 0
        %625 = vmatprep.subr.bf16.mxu0 0
        %626 = vmatpush1.bf16.msra.mxu0 0
        %627 = vmatprep.subr.bf16.mxu0 0
        %628 = vmatpush1.bf16.msra.mxu0 0
        %629 = vmatprep.mubr.bf16.mxu0 0
        %630 = vmatmul.mubr.bf16.gmra.mrb[0].mxu0 %v411
        %v631 = vpop.f32.mrb[0].mxu0
        %v632 = vadd.f32 %v402, %v631
        %v633 = vpop.f32.mrb[0].mxu0
        %v634 = vpop.f32.mrb[0].mxu0
        %v635 = vadd.f32 %v402, %v634
        %v636 = vpop.f32.mrb[0].mxu0
        %637 = vdwg.mxu0
        %v638 = vmax.f32 %v632, 0.0
        %v639 = vmax.f32 %v635, 0.0
        %640 = vst [vmem:[%s191 + $0x40] sm:$0xff] %v638
        %641 = vst [vmem:[%s191 + $0x48] sm:$0xff] %v639
        %v642 = vpack.c.bf16 %v375, %v372
        %643 = vmatprep.subr.bf16.mxu0 0
        %644 = vmatpush1.bf16.msra.mxu0 %v642
        %645 = vmatprep.subr.bf16.mxu0 0
        %646 = vmatpush1.bf16.msra.mxu0 0
        %647 = vmatprep.subr.bf16.mxu0 0
        %648 = vmatpush1.bf16.msra.mxu0 0
        %649 = vmatprep.subr.bf16.mxu0 0
        %650 = vmatpush1.bf16.msra.mxu0 0
        %651 = vmatprep.subr.bf16.mxu0 0
        %652 = vmatpush1.bf16.msra.mxu0 0
        %653 = vmatprep.subr.bf16.mxu0 0
        %654 = vmatpush1.bf16.msra.mxu0 0
        %655 = vmatprep.subr.bf16.mxu0 0
        %656 = vmatpush1.bf16.msra.mxu0 0
        %657 = vmatprep.subr.bf16.mxu0 0
        %658 = vmatpush1.bf16.msra.mxu0 0
        %659 = vmatprep.subr.bf16.mxu0 0
        %660 = vmatpush1.bf16.msra.mxu0 0
        %661 = vmatprep.subr.bf16.mxu0 0
        %662 = vmatpush1.bf16.msra.mxu0 0
        %663 = vmatprep.subr.bf16.mxu0 0
        %664 = vmatpush1.bf16.msra.mxu0 0
        %665 = vmatprep.subr.bf16.mxu0 0
        %666 = vmatpush1.bf16.msra.mxu0 0
        %667 = vmatprep.subr.bf16.mxu0 0
        %668 = vmatpush1.bf16.msra.mxu0 0
        %669 = vmatprep.subr.bf16.mxu0 0
        %670 = vmatpush1.bf16.msra.mxu0 0
        %671 = vmatprep.subr.bf16.mxu0 0
        %672 = vmatpush1.bf16.msra.mxu0 0
        %673 = vmatprep.subr.bf16.mxu0 0
        %674 = vmatpush1.bf16.msra.mxu0 0
        %675 = vmatprep.mubr.bf16.mxu0 0
        %676 = vmatmul.mubr.bf16.gmra.mrb[0].mxu0 %v411
        %v677 = vpop.f32.mrb[0].mxu0
        %v678 = vadd.f32 %v402, %v677
        %v679 = vpop.f32.mrb[0].mxu0
        %v680 = vpop.f32.mrb[0].mxu0
        %v681 = vadd.f32 %v402, %v680
        %v682 = vpop.f32.mrb[0].mxu0
        %683 = vdwg.mxu0
        %v684 = vmax.f32 %v678, 0.0
        %v685 = vmax.f32 %v681, 0.0
        %686 = vst [vmem:[%s191 + $0x50] sm:$0xff] %v684
        %687 = vst [vmem:[%s191 + $0x58] sm:$0xff] %v685
        %v688 = vpack.c.bf16 %v383, %v380
        %689 = vmatprep.subr.bf16.mxu0 0
        %690 = vmatpush1.bf16.msra.mxu0 %v688
        %691 = vmatprep.subr.bf16.mxu0 0
        %692 = vmatpush1.bf16.msra.mxu0 0
        %693 = vmatprep.subr.bf16.mxu0 0
        %694 = vmatpush1.bf16.msra.mxu0 0
        %695 = vmatprep.subr.bf16.mxu0 0
        %696 = vmatpush1.bf16.msra.mxu0 0
        %697 = vmatprep.subr.bf16.mxu0 0
        %698 = vmatpush1.bf16.msra.mxu0 0
        %699 = vmatprep.subr.bf16.mxu0 0
        %700 = vmatpush1.bf16.msra.mxu0 0
        %701 = vmatprep.subr.bf16.mxu0 0
        %702 = vmatpush1.bf16.msra.mxu0 0
        %703 = vmatprep.subr.bf16.mxu0 0
        %704 = vmatpush1.bf16.msra.mxu0 0
        %705 = vmatprep.subr.bf16.mxu0 0
        %706 = vmatpush1.bf16.msra.mxu0 0
        %707 = vmatprep.subr.bf16.mxu0 0
        %708 = vmatpush1.bf16.msra.mxu0 0
        %709 = vmatprep.subr.bf16.mxu0 0
        %710 = vmatpush1.bf16.msra.mxu0 0
        %711 = vmatprep.subr.bf16.mxu0 0
        %712 = vmatpush1.bf16.msra.mxu0 0
        %713 = vmatprep.subr.bf16.mxu0 0
        %714 = vmatpush1.bf16.msra.mxu0 0
        %715 = vmatprep.subr.bf16.mxu0 0
        %716 = vmatpush1.bf16.msra.mxu0 0
        %717 = vmatprep.subr.bf16.mxu0 0
        %718 = vmatpush1.bf16.msra.mxu0 0
        %719 = vmatprep.subr.bf16.mxu0 0
        %720 = vmatpush1.bf16.msra.mxu0 0
        %721 = vmatprep.mubr.bf16.mxu0 0
        %722 = vmatmul.mubr.bf16.gmra.mrb[0].mxu0 %v411
        %v723 = vpop.f32.mrb[0].mxu0
        %v724 = vadd.f32 %v402, %v723
        %v725 = vpop.f32.mrb[0].mxu0
        %v726 = vpop.f32.mrb[0].mxu0
        %v727 = vadd.f32 %v402, %v726
        %v728 = vpop.f32.mrb[0].mxu0
        %729 = vdwg.mxu0
        %v730 = vmax.f32 %v724, 0.0
        %v731 = vmax.f32 %v727, 0.0
        %732 = vst [vmem:[%s191 + $0x60] sm:$0xff] %v730
        %733 = vst [vmem:[%s191 + $0x68] sm:$0xff] %v731
        %v734 = vpack.c.bf16 %v391, %v388
        %735 = vmatprep.subr.bf16.mxu0 0
        %736 = vmatpush1.bf16.msra.mxu0 %v734
        %737 = vmatprep.subr.bf16.mxu0 0
        %738 = vmatpush1.bf16.msra.mxu0 0
        %739 = vmatprep.subr.bf16.mxu0 0
        %740 = vmatpush1.bf16.msra.mxu0 0
        %741 = vmatprep.subr.bf16.mxu0 0
        %742 = vmatpush1.bf16.msra.mxu0 0
        %743 = vmatprep.subr.bf16.mxu0 0
        %744 = vmatpush1.bf16.msra.mxu0 0
        %745 = vmatprep.subr.bf16.mxu0 0
        %746 = vmatpush1.bf16.msra.mxu0 0
        %747 = vmatprep.subr.bf16.mxu0 0
        %748 = vmatpush1.bf16.msra.mxu0 0
        %749 = vmatprep.subr.bf16.mxu0 0
        %750 = vmatpush1.bf16.msra.mxu0 0
        %751 = vmatprep.subr.bf16.mxu0 0
        %752 = vmatpush1.bf16.msra.mxu0 0
        %753 = vmatprep.subr.bf16.mxu0 0
        %754 = vmatpush1.bf16.msra.mxu0 0
        %755 = vmatprep.subr.bf16.mxu0 0
        %756 = vmatpush1.bf16.msra.mxu0 0
        %757 = vmatprep.subr.bf16.mxu0 0
        %758 = vmatpush1.bf16.msra.mxu0 0
        %759 = vmatprep.subr.bf16.mxu0 0
        %760 = vmatpush1.bf16.msra.mxu0 0
        %761 = vmatprep.subr.bf16.mxu0 0
        %762 = vmatpush1.bf16.msra.mxu0 0
        %763 = vmatprep.subr.bf16.mxu0 0
        %764 = vmatpush1.bf16.msra.mxu0 0
        %765 = vmatprep.subr.bf16.mxu0 0
        %766 = vmatpush1.bf16.msra.mxu0 0
        %767 = vmatprep.mubr.bf16.mxu0 0
        %768 = vmatmul.mubr.bf16.gmra.mrb[0].mxu0 %v411
        %v769 = vpop.f32.mrb[0].mxu0
        %v770 = vadd.f32 %v402, %v769
        %v771 = vpop.f32.mrb[0].mxu0
        %v772 = vpop.f32.mrb[0].mxu0
        %v773 = vadd.f32 %v402, %v772
        %v774 = vpop.f32.mrb[0].mxu0
        %775 = vdwg.mxu0
        %v776 = vmax.f32 %v770, 0.0
        %v777 = vmax.f32 %v773, 0.0
        %778 = vst [vmem:[%s191 + $0x70] sm:$0xff] %v776
        %779 = vst [vmem:[%s191 + $0x78] sm:$0xff] %v777
        %s780 = sand.u32 %s115, 1
        %s781 = scalar_lea.sflag [#allocation3], %s780
        %s782 = sand.u32 %s115, 1
        %s783 = smul.addr %s782, 128
        %s784 = scalar_lea.vmem [#allocation2], %s783
        // Predicated region
        $region37: #{tpu_custom_call.1} parent=35 // pred_check
          %p785 = pneg %p125
        $region38: #{tpu_custom_call.1} parent=35 // pred_check_branch
          %787 = sbr.rel (%p785) target = $region40
        $region39: #{tpu_custom_call.1} parent=35 // pred_region
          %s788 = smul.u32 16, %s18
          %s790 = ssub.s32 2048, 2048
          %791 = vsyncadd %s781, %s790
          %s792 = smul.addr %s788, 128
          %s793 = scalar_lea.hbm %s4, %s792
          %s794 = sshll.u32 %s784, 4
          %s795 = int_to_ptr.vmem [resolvable:$true] %s794
          %800 = dma.vmem_to_hbm [thread:$0]  %s795, 2048, %s793, %s781, 128, 128, 8
        $region40: #{tpu_custom_call.1} parent=35 // pred_fallthru
          _
      $region36: #{tpu_custom_call.1} parent=5 // pred_fallthru
        _
      %p801 = scmp.le.s32.totalorder 2, %s13
      // Predicated region
      $region41: #{tpu_custom_call.1} parent=5 // pred_check
        %p802 = pneg %p801
      $region42: #{tpu_custom_call.1} parent=5 // pred_check_branch
        %804 = sbr.rel (%p802) target = $region44
      $region43: #{tpu_custom_call.1} parent=5 // pred_region
        %s805 = ssub.s32 %s13, 2
        // Predicated region
        $region45: #{tpu_custom_call.1} parent=43 // pred_check
          %p806 = pneg %p131
        $region46: #{tpu_custom_call.1} parent=43 // pred_check_branch
          %808 = sbr.rel (%p806) target = $region48
        $region47: #{tpu_custom_call.1} parent=43 // pred_region
          %s809 = sand.u32 %s116, 1
          %s810 = scalar_lea.sflag [#allocation3], %s809
          %s811 = sand.u32 %s116, 1
          %s812 = smul.addr %s811, 128
          %s813 = scalar_lea.vmem [#allocation2], %s812
          %814 = dma.done %s810, 2048
        $region48: #{tpu_custom_call.1} parent=43 // pred_fallthru
          _
      $region44: #{tpu_custom_call.1} parent=5 // pred_fallthru
        _
    $region6: #{tpu_custom_call.1} parent=1 // loop_footer
      %s17 = sadd.s32 1, %s13
    $region7: #{tpu_custom_call.1} parent=1 // loop_footer_branch
      %12 = sbr.rel target = $region3
    $region8: #{tpu_custom_call.1} parent=1 // loop_exit
      _
    %815 = vsyncpa [#allocation3], 1
    %s816 = scalar_lea.sflag [#allocation3], 1
    %817 = vsyncpa %s816, 1

</llo_original>
